<compile_context>
chip_gen: v5e
topology: v5e:2x2
jax: 0.10.0
libtpu: 0.0.40
codegen_flags: <defaults>
</compile_context>

<pallas_src>
import jax
import jax.numpy as jnp
from jax.experimental import pallas as pl
from jax.experimental.pallas import tpu as pltpu


# ----------------------------------------------------------------------------
# helpers
# ----------------------------------------------------------------------------
def _round_up(x, m):
    return ((x + m - 1) // m) * m


def _pick_tile(dim, prefs):
    for p in prefs:
        if dim % p == 0:
            return p
    return dim  # unreachable when dim is padded to a multiple of prefs[-1]


def _vmem_limit(resident_bytes):
    # 2x headroom over computed block residency, clamped to [16 MiB, 64 MiB]
    # (64 MiB = v7x physical VMEM).
    return int(min(64 << 20, max(16 << 20, 2 * resident_bytes)))


# ----------------------------------------------------------------------------
# Kernel 1a: LSTM recurrence, fused-gate path (H % 128 == 0).
# One grid step = one (batch-chunk b, timestep t).
# ----------------------------------------------------------------------------
def lstm_step_fused_kernel(xg_ref, whh_ref, hs_ref, h_scr, c_scr):
    """xg_ref : (1, 4, Bc, H)  x@W_ih + (b_ih+b_hh) for this timestep, per gate
       whh_ref: (H, 4H)        packed hidden->gate weights (gate order i,f,g,o)
       hs_ref : (1, Bc, H)     hidden state output for this timestep
       h_scr  : (Bc, H) f32    hidden carry (VMEM scratch, persists over t)
       c_scr  : (Bc, H) f32    cell carry
    """
    t = pl.program_id(1)
    H = h_scr.shape[1]

    @pl.when(t == 0)
    def _():
        h_scr[...] = jnp.zeros_like(h_scr)
        c_scr[...] = jnp.zeros_like(c_scr)

    # Single (Bc,H)@(H,4H) MXU push per step; the slices below are 128-lane
    # aligned because this kernel is only selected when H % 128 == 0.
    gates = jnp.dot(h_scr[...].astype(whh_ref.dtype), whh_ref[...],
                    preferred_element_type=jnp.float32)              # (Bc,4H)
    i_g = jax.nn.sigmoid(xg_ref[0, 0].astype(jnp.float32) + gates[:, 0 * H:1 * H])
    f_g = jax.nn.sigmoid(xg_ref[0, 1].astype(jnp.float32) + gates[:, 1 * H:2 * H])
    g_g = jnp.tanh(      xg_ref[0, 2].astype(jnp.float32) + gates[:, 2 * H:3 * H])
    o_g = jax.nn.sigmoid(xg_ref[0, 3].astype(jnp.float32) + gates[:, 3 * H:4 * H])

    c = f_g * c_scr[...] + i_g * g_g
    h = o_g * jnp.tanh(c)
    c_scr[...] = c
    h_scr[...] = h
    hs_ref[0] = h.astype(hs_ref.dtype)


# ----------------------------------------------------------------------------
# Kernel 1b: LSTM recurrence, per-gate path (H not a multiple of 128).
# ----------------------------------------------------------------------------
def lstm_step_pergate_kernel(xg_ref, whh_ref, hs_ref, h_scr, c_scr):
    """whh_ref: (4, H, H).  Four per-gate dots keep every gate preactivation a
    lane-dense (Bc, H) slab (no sub-128-lane slicing of a packed 4H vector)."""
    t = pl.program_id(1)

    @pl.when(t == 0)
    def _():
        h_scr[...] = jnp.zeros_like(h_scr)
        c_scr[...] = jnp.zeros_like(c_scr)

    h_in = h_scr[...].astype(whh_ref.dtype)
    pre = [xg_ref[0, k].astype(jnp.float32)
           + jnp.dot(h_in, whh_ref[k], preferred_element_type=jnp.float32)
           for k in range(4)]
    i_g = jax.nn.sigmoid(pre[0])
    f_g = jax.nn.sigmoid(pre[1])
    g_g = jnp.tanh(pre[2])
    o_g = jax.nn.sigmoid(pre[3])

    c = f_g * c_scr[...] + i_g * g_g
    h = o_g * jnp.tanh(c)
    c_scr[...] = c
    h_scr[...] = h
    hs_ref[0] = h.astype(hs_ref.dtype)


# ----------------------------------------------------------------------------
# Kernel 2: hoisted output projection tile  (tm, H) @ (H, tn) + b -> (tm, tn)
# ----------------------------------------------------------------------------
def proj_kernel(h_ref, w_ref, b_ref, o_ref):
    o_ref[...] = (jnp.dot(h_ref[...], w_ref[...],
                          preferred_element_type=jnp.float32)
                  + b_ref[...].astype(jnp.float32)).astype(o_ref.dtype)


# ----------------------------------------------------------------------------
# Wrapper
# ----------------------------------------------------------------------------
def decoder_rnn_forward(features, captions, params, compute_dtype=jnp.float32):
    """features: (B, E) f32, captions: (B, cap_len) int32 -> (B, cap_len, V)."""
    embed_w = params["embed_w"]          # (Vocab, E)
    w_ih4 = params["w_ih4"]              # (E, 4, H)
    w_hh_k = params["w_hh_kernel"]       # (H, 4H) fused or (4, H, H) per-gate
    b4 = params["b4"]                    # (4, H)    combined b_ih + b_hh
    w_out = params["w_out"]              # (H, Vp)   V padded to 128-multiple
    b_out = params["b_out"]              # (1, Vp)
    V = params["vocab_size"]

    B, _ = features.shape
    H = b4.shape[1]
    Vp = w_out.shape[1]
    T = captions.shape[1]                # 1 + (cap_len - 1)
    fused = (w_hh_k.ndim == 2)
    it = jnp.dtype(compute_dtype).itemsize

    # ---- glue (plain XLA): gather embeddings directly time-major ------------
    ids_tm = captions[:, :-1].T                              # (T-1, B)
    cap_emb_tm = jnp.take(embed_w, ids_tm, axis=0)           # (T-1, B, E)
    x_tm = jnp.concatenate(
        [features[None].astype(jnp.float32),
         cap_emb_tm.astype(jnp.float32)], axis=0)            # (T, B, E)

    # ---- pad batch (sublane dim) to a multiple of 8 --------------------------
    Bp = _round_up(B, 8)
    if Bp != B:
        x_tm = jnp.pad(x_tm, ((0, 0), (0, Bp - B), (0, 0)))

    # ---- hoisted input projection: one big matmul, bias folded in ------------
    xg = (jnp.einsum('tbe,egh->tgbh', x_tm, w_ih4)
          + b4[None, :, None, :]).astype(compute_dtype)      # (T, 4, Bp, H)

    # ---- batch chunking for megacore (v7x second TC); no-op on v5e/v6e -------
    n_b = 2 if (Bp >= 16 and Bp % 16 == 0) else 1
    Bc = Bp // n_b

    whh = w_hh_k.astype(compute_dtype)
    kernel = lstm_step_fused_kernel if fused else lstm_step_pergate_kernel
    whh_spec = (pl.BlockSpec((H, 4 * H), lambda b, t: (0, 0)) if fused
                else pl.BlockSpec((4, H, H), lambda b, t: (0, 0, 0)))

    rec_resident = (2 * 4 * Bc * H * it      # xg timestep block, double-buffered
                    + 2 * whh.size * it      # W_hh (2 bufs, DMA'd once)
                    + 2 * Bc * H * it        # hs out block, double-buffered
                    + 2 * Bc * H * 4)        # h/c f32 scratch

    # ---- Pallas recurrence: time axis streamed, h/c carried in VMEM scratch --
    hs = pl.pallas_call(
        kernel,
        out_shape=jax.ShapeDtypeStruct((T, Bp, H), compute_dtype),
        grid_spec=pltpu.PrefetchScalarGridSpec(
            num_scalar_prefetch=0,
            grid=(n_b, T),
            in_specs=[
                pl.BlockSpec((1, 4, Bc, H), lambda b, t: (t, 0, b, 0)),  # xg
                whh_spec,                                                # W_hh
            ],
            out_specs=pl.BlockSpec((1, Bc, H), lambda b, t: (t, b, 0)),
            scratch_shapes=[pltpu.VMEM((Bc, H), jnp.float32),   # h carry
                            pltpu.VMEM((Bc, H), jnp.float32)],  # c carry
        ),
        compiler_params=pltpu.CompilerParams(
            dimension_semantics=("parallel", "arbitrary"),
            vmem_limit_bytes=_vmem_limit(rec_resident)),
    )(xg, whh)                                               # (T, Bp, H)

    # ---- output projection: one well-tiled matmul, W_out fetched once per j --
    hs_bt = jnp.transpose(hs, (1, 0, 2)).reshape(Bp * T, H)  # small (H-wide)
    M = Bp * T
    Mp = _round_up(M, 128)
    if Mp != M:
        hs_bt = jnp.pad(hs_bt, ((0, Mp - M), (0, 0)))
    tm = _pick_tile(Mp, (256, 128))      # caps respect v7x 64 MiB VMEM
    tn = _pick_tile(Vp, (512, 256, 128))

    proj_resident = 2 * (tm * H * it + H * tn * it + tn * 4 + tm * tn * 4)

    logits = pl.pallas_call(
        proj_kernel,
        out_shape=jax.ShapeDtypeStruct((Mp, Vp), jnp.float32),
        grid_spec=pltpu.PrefetchScalarGridSpec(
            num_scalar_prefetch=0,
            # V axis OUTER, M axis INNER: w/b block index (0, j) is constant
            # across the inner axis, so each W_out column tile streams from
            # HBM once per generation instead of M//tm times.
            grid=(Vp // tn, Mp // tm),
            in_specs=[
                pl.BlockSpec((tm, H), lambda j, i: (i, 0)),   # hidden states
                pl.BlockSpec((H, tn), lambda j, i: (0, j)),   # W_out
                pl.BlockSpec((1, tn), lambda j, i: (0, j)),   # b_out
            ],
            out_specs=pl.BlockSpec((tm, tn), lambda j, i: (i, j)),
        ),
        compiler_params=pltpu.CompilerParams(
            dimension_semantics=("parallel", "parallel"),     # megacore on v7x
            vmem_limit_bytes=_vmem_limit(proj_resident)),
    )(hs_bt, w_out.astype(compute_dtype), b_out)             # (Mp, Vp)

    # Slice off M/V padding (free), reshape, drop padded batch rows.
    return logits[:M, :V].reshape(Bp, T, V)[:B]              # (B, T, V)


# ----------------------------------------------------------------------------
# Parameter construction (PyTorch-like layout) + kernel rearrangement
# ----------------------------------------------------------------------------
def make_params(key, embed_size, hidden_size, vocab_size):
    ks = jax.random.split(key, 6)
    scale = 0.1
    return {
        # nn.Embedding(vocab_size, embed_size)
        "embed_w": scale * jax.random.normal(
            ks[0], (vocab_size, embed_size), jnp.float32),
        # nn.LSTM weights, stored pre-transposed: x @ W_ih + h @ W_hh + b
        # gate order along 4H is PyTorch's (i, f, g, o)
        "w_ih": scale * jax.random.normal(
            ks[1], (embed_size, 4 * hidden_size), jnp.float32),
        "w_hh": scale * jax.random.normal(
            ks[2], (hidden_size, 4 * hidden_size), jnp.float32),
        # combined b_ih + b_hh
        "b": scale * jax.random.normal(
            ks[3], (1, 4 * hidden_size), jnp.float32),
        # nn.Linear(hidden_size, vocab_size), stored transposed
        "w_out": scale * jax.random.normal(
            ks[4], (hidden_size, vocab_size), jnp.float32),
        "b_out": scale * jax.random.normal(
            ks[5], (1, vocab_size), jnp.float32),
    }


def prepare_params(params):
    """One-time rearrangement of weights into kernel-friendly layouts."""
    E, H4 = params["w_ih"].shape
    H = params["w_hh"].shape[0]
    V = params["w_out"].shape[1]
    assert H4 == 4 * H
    fused = (H % 128 == 0)
    w_hh_kernel = (params["w_hh"] if fused
                   else params["w_hh"].reshape(H, 4, H).transpose(1, 0, 2))
    Vp = _round_up(V, 128)
    w_out = params["w_out"]
    b_out = params["b_out"]
    if Vp != V:                       # pad vocab to lane multiple (sliced off later)
        w_out = jnp.pad(w_out, ((0, 0), (0, Vp - V)))
        b_out = jnp.pad(b_out, ((0, 0), (0, Vp - V)))
    return {
        "embed_w": params["embed_w"],
        "w_ih4": params["w_ih"].reshape(E, 4, H),            # (E, 4, H)
        "w_hh_kernel": w_hh_kernel,                          # (H,4H) or (4,H,H)
        "b4": params["b"].reshape(4, H),                     # (4, H)
        "w_out": w_out,                                      # (H, Vp)
        "b_out": b_out,                                      # (1, Vp)
        "vocab_size": V,
    }


# ----------------------------------------------------------------------------
# Pure-JAX reference (mirrors PyTorch semantics) for verification
# ----------------------------------------------------------------------------
def reference_forward(features, captions, params):
    cap_emb = jnp.take(params["embed_w"], captions[:, :-1], axis=0)
    x = jnp.concatenate([features[:, None, :], cap_emb], axis=1)   # (B, T, E)
    B = x.shape[0]
    H = params["w_hh"].shape[0]
    h = jnp.zeros((B, H), jnp.float32)
    c = jnp.zeros((B, H), jnp.float32)

    def step(carry, x_t):
        h, c = carry
        gates = x_t @ params["w_ih"] + h @ params["w_hh"] + params["b"]
        i = jax.nn.sigmoid(gates[:, 0 * H:1 * H])
        f = jax.nn.sigmoid(gates[:, 1 * H:2 * H])
        g = jnp.tanh(gates[:, 2 * H:3 * H])
        o = jax.nn.sigmoid(gates[:, 3 * H:4 * H])
        c = f * c + i * g
        h = o * jnp.tanh(c)
        return (h, c), h

    _, hs = jax.lax.scan(step, (h, c), jnp.transpose(x, (1, 0, 2)))
    hs = jnp.transpose(hs, (1, 0, 2))                              # (B, T, H)
    return hs @ params["w_out"] + params["b_out"]                  # (B, T, V)


# TODO(synk): DecoderRNN.sample() (greedy decode loop) not implemented; only
# the forward() training path was requested.

if __name__ == "__main__":
    def run_case(embed_size, hidden_size, vocab_size, batch, cap_len):
        key = jax.random.PRNGKey(0)
        k_par, k_feat, k_cap = jax.random.split(key, 3)
        base_params = make_params(k_par, embed_size, hidden_size, vocab_size)
        kern_params = prepare_params(base_params)
        features = jax.random.normal(k_feat, (batch, embed_size), jnp.float32)
        captions = jax.random.randint(k_cap, (batch, cap_len), 0, vocab_size,
                                      jnp.int32)
        out = jax.block_until_ready(
            decoder_rnn_forward(features, captions, kern_params))
        ref = jax.block_until_ready(
            reference_forward(features, captions, base_params))
        assert out.shape == (batch, cap_len, vocab_size), out.shape
        err = float(jnp.max(jnp.abs(out - ref)))
        assert jnp.allclose(out, ref, atol=1e-4, rtol=1e-4), err

    # Per-gate recurrence path (H not a multiple of 128) + batch padding.
    run_case(embed_size=32, hidden_size=32, vocab_size=128, batch=2, cap_len=8)
    # Fused-gate path (H % 128 == 0) + vocab padded to a lane multiple.
    run_case(embed_size=32, hidden_size=128, vocab_size=200, batch=3, cap_len=8)

    print("KERNEL_OK")
</pallas_src>

<mosaic_0001>
module attributes {stable_mosaic.version = 11 : i64} {
  func.func @lstm_step_pergate_kernel(%arg0: i32, %arg1: i32, %arg2: memref<1x4x8x32xf32, #tpu.memory_space<vmem>>, %arg3: memref<4x32x32xf32, #tpu.memory_space<vmem>>, %arg4: memref<1x8x32xf32, #tpu.memory_space<vmem>>, %arg5: memref<8x32xf32, #tpu.memory_space<vmem>>, %arg6: memref<8x32xf32, #tpu.memory_space<vmem>>) attributes {dimension_semantics = [#tpu.dimension_semantics<parallel>, #tpu.dimension_semantics<arbitrary>], iteration_bounds = array<i64: 1, 8>, scalar_prefetch = 0 : i64, scratch_operands = 2 : i64, tpu.core_type = #tpu.core_type<tc>, window_params = [{transform_indices = @transform_0, window_bounds = array<i64: 1, 4, 8, 32>}, {pipeline_mode = #tpu.pipeline_mode<synchronous>, transform_indices = @transform_1, window_bounds = array<i64: 4, 32, 32>}, {transform_indices = @transform_2, window_bounds = array<i64: 1, 8, 32>}]} {
    %c0_i32 = arith.constant 0 : i32
    %0 = arith.cmpi eq, %arg1, %c0_i32 : i32
    %1 = arith.extui %0 : i1 to i32
    %c0_i32_0 = arith.constant 0 : i32
    %2 = arith.cmpi ne, %1, %c0_i32_0 : i32
    scf.if %2 {
      %cst_42 = arith.constant 0.000000e+00 : f32
      %55 = vector.broadcast %cst_42 : f32 to vector<8x32xf32>
      %c0_43 = arith.constant 0 : index
      %c0_44 = arith.constant 0 : index
      %56 = vector.load %arg5[%c0_43, %c0_44] : memref<8x32xf32, #tpu.memory_space<vmem>>, vector<8x32xf32>
      tpu.vector_store %arg5[%c0_43, %c0_44], %55 {strides = array<i32>} : memref<8x32xf32, #tpu.memory_space<vmem>>, vector<8x32xf32>,
      %cst_45 = arith.constant 0.000000e+00 : f32
      %57 = vector.broadcast %cst_45 : f32 to vector<8x32xf32>
      %c0_46 = arith.constant 0 : index
      %c0_47 = arith.constant 0 : index
      %58 = vector.load %arg6[%c0_46, %c0_47] : memref<8x32xf32, #tpu.memory_space<vmem>>, vector<8x32xf32>
      tpu.vector_store %arg6[%c0_46, %c0_47], %57 {strides = array<i32>} : memref<8x32xf32, #tpu.memory_space<vmem>>, vector<8x32xf32>,
    } else {
    }
    %c0 = arith.constant 0 : index
    %c0_1 = arith.constant 0 : index
    %3 = vector.load %arg5[%c0, %c0_1] : memref<8x32xf32, #tpu.memory_space<vmem>>, vector<8x32xf32>
    %c0_2 = arith.constant 0 : index
    %c0_3 = arith.constant 0 : index
    %c0_4 = arith.constant 0 : index
    %c0_5 = arith.constant 0 : index
    %4 = vector.load %arg2[%c0_2, %c0_3, %c0_4, %c0_5] : memref<1x4x8x32xf32, #tpu.memory_space<vmem>>, vector<1x1x8x32xf32>
    %5 = vector.shape_cast %4 : vector<1x1x8x32xf32> to vector<8x32xf32>
    %c0_6 = arith.constant 0 : index
    %c0_7 = arith.constant 0 : index
    %c0_8 = arith.constant 0 : index
    %6 = vector.load %arg3[%c0_6, %c0_7, %c0_8] : memref<4x32x32xf32, #tpu.memory_space<vmem>>, vector<1x32x32xf32>
    %7 = vector.shape_cast %6 : vector<1x32x32xf32> to vector<32x32xf32>
    %cst = arith.constant dense<0.000000e+00> : vector<8x32xf32>
    %8 = tpu.matmul %3, %7, %cst {dimension_numbers = #tpu.dot_dimension_numbers<[1], [0], [0], [1], [0, 0, 1, 1], [], []>} : vector<8x32xf32>, vector<32x32xf32>, vector<8x32xf32> -> vector<8x32xf32>
    %9 = arith.addf %5, %8 : vector<8x32xf32>
    %c0_9 = arith.constant 0 : index
    %c1 = arith.constant 1 : index
    %c0_10 = arith.constant 0 : index
    %c0_11 = arith.constant 0 : index
    %10 = vector.load %arg2[%c0_9, %c1, %c0_10, %c0_11] : memref<1x4x8x32xf32, #tpu.memory_space<vmem>>, vector<1x1x8x32xf32>
    %11 = vector.shape_cast %10 : vector<1x1x8x32xf32> to vector<8x32xf32>
    %c1_12 = arith.constant 1 : index
    %c0_13 = arith.constant 0 : index
    %c0_14 = arith.constant 0 : index
    %12 = vector.load %arg3[%c1_12, %c0_13, %c0_14] : memref<4x32x32xf32, #tpu.memory_space<vmem>>, vector<1x32x32xf32>
    %13 = vector.shape_cast %12 : vector<1x32x32xf32> to vector<32x32xf32>
    %cst_15 = arith.constant dense<0.000000e+00> : vector<8x32xf32>
    %14 = tpu.matmul %3, %13, %cst_15 {dimension_numbers = #tpu.dot_dimension_numbers<[1], [0], [0], [1], [0, 0, 1, 1], [], []>} : vector<8x32xf32>, vector<32x32xf32>, vector<8x32xf32> -> vector<8x32xf32>
    %15 = arith.addf %11, %14 : vector<8x32xf32>
    %c0_16 = arith.constant 0 : index
    %c2 = arith.constant 2 : index
    %c0_17 = arith.constant 0 : index
    %c0_18 = arith.constant 0 : index
    %16 = vector.load %arg2[%c0_16, %c2, %c0_17, %c0_18] : memref<1x4x8x32xf32, #tpu.memory_space<vmem>>, vector<1x1x8x32xf32>
    %17 = vector.shape_cast %16 : vector<1x1x8x32xf32> to vector<8x32xf32>
    %c2_19 = arith.constant 2 : index
    %c0_20 = arith.constant 0 : index
    %c0_21 = arith.constant 0 : index
    %18 = vector.load %arg3[%c2_19, %c0_20, %c0_21] : memref<4x32x32xf32, #tpu.memory_space<vmem>>, vector<1x32x32xf32>
    %19 = vector.shape_cast %18 : vector<1x32x32xf32> to vector<32x32xf32>
    %cst_22 = arith.constant dense<0.000000e+00> : vector<8x32xf32>
    %20 = tpu.matmul %3, %19, %cst_22 {dimension_numbers = #tpu.dot_dimension_numbers<[1], [0], [0], [1], [0, 0, 1, 1], [], []>} : vector<8x32xf32>, vector<32x32xf32>, vector<8x32xf32> -> vector<8x32xf32>
    %21 = arith.addf %17, %20 : vector<8x32xf32>
    %c0_23 = arith.constant 0 : index
    %c3 = arith.constant 3 : index
    %c0_24 = arith.constant 0 : index
    %c0_25 = arith.constant 0 : index
    %22 = vector.load %arg2[%c0_23, %c3, %c0_24, %c0_25] : memref<1x4x8x32xf32, #tpu.memory_space<vmem>>, vector<1x1x8x32xf32>
    %23 = vector.shape_cast %22 : vector<1x1x8x32xf32> to vector<8x32xf32>
    %c3_26 = arith.constant 3 : index
    %c0_27 = arith.constant 0 : index
    %c0_28 = arith.constant 0 : index
    %24 = vector.load %arg3[%c3_26, %c0_27, %c0_28] : memref<4x32x32xf32, #tpu.memory_space<vmem>>, vector<1x32x32xf32>
    %25 = vector.shape_cast %24 : vector<1x32x32xf32> to vector<32x32xf32>
    %cst_29 = arith.constant dense<0.000000e+00> : vector<8x32xf32>
    %26 = tpu.matmul %3, %25, %cst_29 {dimension_numbers = #tpu.dot_dimension_numbers<[1], [0], [0], [1], [0, 0, 1, 1], [], []>} : vector<8x32xf32>, vector<32x32xf32>, vector<8x32xf32> -> vector<8x32xf32>
    %27 = arith.addf %23, %26 : vector<8x32xf32>
    %28 = arith.negf %9 : vector<8x32xf32>
    %29 = math.exp %28 : vector<8x32xf32>
    %cst_30 = arith.constant 1.000000e+00 : f32
    %30 = vector.broadcast %cst_30 : f32 to vector<8x32xf32>
    %31 = arith.addf %30, %29 : vector<8x32xf32>
    %32 = arith.divf %30, %31 : vector<8x32xf32>
    %33 = arith.negf %15 : vector<8x32xf32>
    %34 = math.exp %33 : vector<8x32xf32>
    %cst_31 = arith.constant 1.000000e+00 : f32
    %35 = vector.broadcast %cst_31 : f32 to vector<8x32xf32>
    %36 = arith.addf %35, %34 : vector<8x32xf32>
    %37 = arith.divf %35, %36 : vector<8x32xf32>
    %38 = math.tanh %21 : vector<8x32xf32>
    %39 = arith.negf %27 : vector<8x32xf32>
    %40 = math.exp %39 : vector<8x32xf32>
    %cst_32 = arith.constant 1.000000e+00 : f32
    %41 = vector.broadcast %cst_32 : f32 to vector<8x32xf32>
    %42 = arith.addf %41, %40 : vector<8x32xf32>
    %43 = arith.divf %41, %42 : vector<8x32xf32>
    %c0_33 = arith.constant 0 : index
    %c0_34 = arith.constant 0 : index
    %44 = vector.load %arg6[%c0_33, %c0_34] : memref<8x32xf32, #tpu.memory_space<vmem>>, vector<8x32xf32>
    %45 = arith.mulf %37, %44 : vector<8x32xf32>
    %46 = arith.mulf %32, %38 : vector<8x32xf32>
    %47 = arith.addf %45, %46 : vector<8x32xf32>
    %48 = math.tanh %47 : vector<8x32xf32>
    %49 = arith.mulf %43, %48 : vector<8x32xf32>
    %c0_35 = arith.constant 0 : index
    %c0_36 = arith.constant 0 : index
    %50 = vector.load %arg6[%c0_35, %c0_36] : memref<8x32xf32, #tpu.memory_space<vmem>>, vector<8x32xf32>
    tpu.vector_store %arg6[%c0_35, %c0_36], %47 {strides = array<i32>} : memref<8x32xf32, #tpu.memory_space<vmem>>, vector<8x32xf32>,
    %c0_37 = arith.constant 0 : index
    %c0_38 = arith.constant 0 : index
    %51 = vector.load %arg5[%c0_37, %c0_38] : memref<8x32xf32, #tpu.memory_space<vmem>>, vector<8x32xf32>
    tpu.vector_store %arg5[%c0_37, %c0_38], %49 {strides = array<i32>} : memref<8x32xf32, #tpu.memory_space<vmem>>, vector<8x32xf32>,
    %c0_39 = arith.constant 0 : index
    %c0_40 = arith.constant 0 : index
    %c0_41 = arith.constant 0 : index
    %52 = vector.load %arg4[%c0_39, %c0_40, %c0_41] : memref<1x8x32xf32, #tpu.memory_space<vmem>>, vector<1x8x32xf32>
    %53 = vector.shape_cast %52 : vector<1x8x32xf32> to vector<8x32xf32>
    %54 = vector.shape_cast %49 : vector<8x32xf32> to vector<1x8x32xf32>
    tpu.vector_store %arg4[%c0_39, %c0_40, %c0_41], %54 {strides = array<i32>} : memref<1x8x32xf32, #tpu.memory_space<vmem>>, vector<1x8x32xf32>,
    return
  }
  func.func @transform_0(%arg0: i32, %arg1: i32) -> (i32, i32, i32, i32) {
    %c0_i32 = arith.constant 0 : i32
    %c0_i32_0 = arith.constant 0 : i32
    %c0_i32_1 = arith.constant 0 : i32
    return %arg1, %c0_i32, %arg0, %c0_i32_0 : i32, i32, i32, i32
  }
  func.func @transform_1(%arg0: i32, %arg1: i32) -> (i32, i32, i32) {
    %c0_i32 = arith.constant 0 : i32
    %c0_i32_0 = arith.constant 0 : i32
    %c0_i32_1 = arith.constant 0 : i32
    %c0_i32_2 = arith.constant 0 : i32
    return %c0_i32, %c0_i32_0, %c0_i32_1 : i32, i32, i32
  }
  func.func @transform_2(%arg0: i32, %arg1: i32) -> (i32, i32, i32) {
    %c0_i32 = arith.constant 0 : i32
    %c0_i32_0 = arith.constant 0 : i32
    return %arg1, %arg0, %c0_i32 : i32, i32, i32
  }
}

</mosaic_0001>

<llo_original>
// kernel: tpu_custom_call.1
$region0: #{tpu_custom_call.1}
  #allocation0 [shape = 'u32[]', space=smem, size = 0x4, offset = 0x4, fixed_abs, tag = 'smem constant byte address 0x4 - core index']
  #allocation1 [shape = 'u32[72,128]{1,0:T(1,128)}', space=vmem, size = 0x9000, scoped, tag = 'internal scratch']
  #allocation2 [shape = 'f32[8,32]{1,0:T(8,128)}', space=vmem, size = 0x1000, scoped, tag = 'scratch operand']
  #allocation3 [shape = 'f32[8,32]{1,0:T(8,128)}', space=vmem, size = 0x1000, scoped, tag = 'scratch operand']
  %s0 = inlined_call_operand.hbm [shape: f32[8,4,8,32], index: 0, kind: input, shape index: {}]
  %s1 = inlined_call_operand.hbm [shape: f32[4,32,32], index: 1, kind: input, shape index: {}]
  %s2 = inlined_call_operand.hbm [shape: f32[8,8,32], index: 2, kind: output, shape index: {}]
  %s3 = sld [smem:[#allocation0]]
  $region53: #{tpu_custom_call.1} parent=0
    _
  %s5 = ssub.s32 1, %s3
  %s6 = scalar_select 0, %s5, %s3
  $region1: #{tpu_custom_call.1} parent=0
    #allocation4 [shape = 'u8[32768]{0}', space=vmem, size = 0x8000, scoped, tag = 'input window, operand 0']
    #allocation5 [shape = 's32[2]{0}', space=sflag, size = 0x8, scoped, tag = 'scoped memory for tpu_custom_call.1']
    #allocation6 [shape = 's32[2]{0}', space=sflag, size = 0x8, scoped, tag = 'scoped memory for tpu_custom_call.1']
    #allocation7 [shape = 'u8[65536]{0}', space=vmem, size = 0x10000, scoped, tag = 'input window, operand 1, single buffered']
    #allocation8 [shape = 's32[1]{0}', space=sflag, size = 0x4, scoped, tag = 'scoped memory for tpu_custom_call.1']
    #allocation9 [shape = 'u8[8192]{0}', space=vmem, size = 0x2000, scoped, tag = 'output window, operand 0']
    %7 = vsyncpa [#allocation5], 0
    %s8 = scalar_lea.sflag [#allocation5], 1
    %9 = vsyncpa %s8, 0
    %10 = vsyncpa [#allocation8], 0
    %11 = vsyncpa [#allocation6], 0
    %s12 = scalar_lea.sflag [#allocation6], 1
    %13 = vsyncpa %s12, 0
    loop: start=0, step=1, limit=10
    $region2: #{tpu_custom_call.1} parent=1 // loop_pre_header
      _
    $region3: #{tpu_custom_call.1} parent=1 // loop_header
      %s15 = sphi 0, %s19
      %p16 = scmp.ge.s32.totalorder %s15, 10
      %s22 = sphi 0, %s34
      %s23 = sphi 0, %s30
      %s24 = sphi 0, %s22
      %s25 = sphi 0, %s23
      %s26 = sphi 0, %s24
      %s27 = sphi 0, %s25
      %s39 = sphi 0, %s41
      %s42 = sphi 0, %s39
      %s43 = sphi 0, %s42
      %s59 = sphi 0, %s43
      %s63 = sphi 0, %s63
      %s65 = sphi 0, %s63
      %s66 = sphi 0, %s65
      %s80 = sphi 0, %s66
      %s88 = sphi 0, %s90
      %s91 = sphi 0, %s88
      %s92 = sphi 0, %s91
      %s108 = sphi 0, %s92
    $region4: #{tpu_custom_call.1} parent=1 // loop_header_branch
      %18 = sbr.rel (%p16) target = $region8
    $region5: #{tpu_custom_call.1} parent=1 // loop_body
      %s20 = ssub.s32 %s15, 1
      %s21 = ssub.s32 %s15, 2
      %s28 = sadd.s32 1, %s23
      %p29 = scmp.ge.s32.totalorder %s28, 8
      %s30 = scalar_select %p29, 0, %s28
      %s31 = sadd.s32 1, %s22
      %s32 = scalar_select %p29, %s31, %s22
      %p33 = scmp.ge.s32.totalorder %s32, 1
      %s34 = scalar_select %p33, 0, %s32
      %s35 = ssub.s32 %s23, %s30
      %s36 = ssub.s32 %s22, %s34
      %s37 = sor.u32 %s35, %s36
      %p38 = scmp.eq.s32.totalorder %s37, 0
      %s40 = sadd.s32 %s39, 1
      %s41 = scalar_select %p38, %s39, %s40
      %p44 = pneg %p38
      %p45 = scmp.eq.s32.totalorder %s15, 7
      %p46 = por %p44, %p45
      %p47 = scmp.ne.s32.totalorder %s39, %s42
      %p48 = scmp.eq.s32.totalorder %s15, 0
      %p49 = por %p47, %p48
      %p50 = scmp.ne.s32.totalorder %s39, %s42
      %p51 = scmp.eq.s32.totalorder %s20, 7
      %p52 = por %p50, %p51
      %p53 = scmp.ne.s32.totalorder %s42, %s43
      %p54 = scmp.eq.s32.totalorder %s20, 0
      %p55 = por %p53, %p54
      %p56 = scmp.ne.s32.totalorder %s42, %s43
      %p57 = scmp.eq.s32.totalorder %s21, 7
      %p58 = por %p56, %p57
      %p60 = scmp.ne.s32.totalorder %s43, %s59
      %p61 = scmp.eq.s32.totalorder %s21, 0
      %p62 = por %p60, %p61
      %s64 = sadd.s32 %s63, 1
      %p67 = scmp.eq.s32.totalorder %s15, 7
      %p68 = scmp.ne.s32.totalorder %s63, %s65
      %p69 = scmp.eq.s32.totalorder %s15, 0
      %p70 = por %p68, %p69
      %p71 = scmp.ne.s32.totalorder %s63, %s65
      %p72 = scmp.eq.s32.totalorder %s20, 7
      %p73 = por %p71, %p72
      %p74 = scmp.ne.s32.totalorder %s65, %s66
      %p75 = scmp.eq.s32.totalorder %s20, 0
      %p76 = por %p74, %p75
      %p77 = scmp.ne.s32.totalorder %s65, %s66
      %p78 = scmp.eq.s32.totalorder %s21, 7
      %p79 = por %p77, %p78
      %p81 = scmp.ne.s32.totalorder %s66, %s80
      %p82 = scmp.eq.s32.totalorder %s21, 0
      %p83 = por %p81, %p82
      %s84 = ssub.s32 %s23, %s30
      %s85 = ssub.s32 %s22, %s34
      %s86 = sor.u32 %s84, %s85
      %p87 = scmp.eq.s32.totalorder %s86, 0
      %s89 = sadd.s32 %s88, 1
      %s90 = scalar_select %p87, %s88, %s89
      %p93 = pneg %p87
      %p94 = scmp.eq.s32.totalorder %s15, 7
      %p95 = por %p93, %p94
      %p96 = scmp.ne.s32.totalorder %s88, %s91
      %p97 = scmp.eq.s32.totalorder %s15, 0
      %p98 = por %p96, %p97
      %p99 = scmp.ne.s32.totalorder %s88, %s91
      %p100 = scmp.eq.s32.totalorder %s20, 7
      %p101 = por %p99, %p100
      %p102 = scmp.ne.s32.totalorder %s91, %s92
      %p103 = scmp.eq.s32.totalorder %s20, 0
      %p104 = por %p102, %p103
      %p105 = scmp.ne.s32.totalorder %s91, %s92
      %p106 = scmp.eq.s32.totalorder %s21, 7
      %p107 = por %p105, %p106
      %p109 = scmp.ne.s32.totalorder %s92, %s108
      %p110 = scmp.eq.s32.totalorder %s21, 0
      %p111 = por %p109, %p110
      %p112 = scmp.le.s32.totalorder 1, %s15
      %p113 = scmp.lt.s32.totalorder %s15, 9
      %p114 = pnand %p112, %p113
      %p115 = pneg %p114
      // Predicated region
      $region9: #{tpu_custom_call.1} parent=5 // pred_check
        _
      $region10: #{tpu_custom_call.1} parent=5 // pred_check_branch
        %117 = sbr.rel (%p114) target = $region12
      $region11: #{tpu_custom_call.1} parent=5 // pred_region
        %s118 = ssub.s32 %s15, 1
        // Predicated region
        $region13: #{tpu_custom_call.1} parent=11 // pred_check
          %p119 = pneg %p76
        $region14: #{tpu_custom_call.1} parent=11 // pred_check_branch
          %121 = sbr.rel (%p119) target = $region16
        $region15: #{tpu_custom_call.1} parent=11 // pred_region
          %123 = vsyncadd [#allocation8], 0
          %s124 = sshll.u32 %s1, 4
          %s125 = int_to_ptr.hbm [resolvable:$true] %s124
          %s126 = sshll.u32 [#allocation7], 4
          %s127 = int_to_ptr.vmem [resolvable:$true] %s126
          %132 = dma.hbm_to_vmem [thread:$0]  %s125, 2048, %s127, [#allocation8], 128, 128, 8
        $region16: #{tpu_custom_call.1} parent=11 // pred_fallthru
          _
      $region12: #{tpu_custom_call.1} parent=5 // pred_fallthru
        _
      %p133 = scmp.lt.s32.totalorder %s15, 8
      // Predicated region
      $region17: #{tpu_custom_call.1} parent=5 // pred_check
        %p134 = pneg %p133
      $region18: #{tpu_custom_call.1} parent=5 // pred_check_branch
        %136 = sbr.rel (%p134) target = $region20
      $region19: #{tpu_custom_call.1} parent=5 // pred_region
        // Predicated region
        $region21: #{tpu_custom_call.1} parent=19 // pred_check
          %p137 = pneg %p49
        $region22: #{tpu_custom_call.1} parent=19 // pred_check_branch
          %139 = sbr.rel (%p137) target = $region24
        $region23: #{tpu_custom_call.1} parent=19 // pred_region
          %s140 = sand.u32 %s39, 1
          %s141 = scalar_lea.sflag [#allocation5], %s140
          %s142 = sand.u32 %s39, 1
          %s143 = smul.addr %s142, 32
          %s144 = scalar_lea.vmem [#allocation4], %s143
          %146 = vsyncadd %s141, 0
          %s147 = smul.addr %s23, 4
          %s148 = sadd.s32 %s22, %s147
          %s149 = smul.addr %s148, 8
          %s150 = scalar_lea.hbm %s0, %s149
          %s151 = sshll.u32 %s150, 4
          %s152 = int_to_ptr.hbm [resolvable:$true] %s151
          %s153 = sshll.u32 %s144, 4
          %s154 = int_to_ptr.vmem [resolvable:$true] %s153
          %159 = dma.hbm_to_vmem [thread:$0]  %s152, 512, %s154, %s141, 128, 128, 8
        $region24: #{tpu_custom_call.1} parent=19 // pred_fallthru
          _
      $region20: #{tpu_custom_call.1} parent=5 // pred_fallthru
        _
      %p160 = scmp.le.s32.totalorder 1, %s15
      %p161 = scmp.lt.s32.totalorder %s15, 9
      %p162 = pnand %p160, %p161
      %p163 = pneg %p162
      // Predicated region
      $region25: #{tpu_custom_call.1} parent=5 // pred_check
        _
      $region26: #{tpu_custom_call.1} parent=5 // pred_check_branch
        %165 = sbr.rel (%p162) target = $region28
      $region27: #{tpu_custom_call.1} parent=5 // pred_region
        %s166 = ssub.s32 %s15, 1
        %s167 = sand.u32 %s42, 1
        %s168 = scalar_lea.sflag [#allocation5], %s167
        %s169 = sand.u32 %s42, 1
        %s170 = smul.addr %s169, 32
        %s171 = scalar_lea.vmem [#allocation4], %s170
        // Predicated region
        $region29: #{tpu_custom_call.1} parent=27 // pred_check
          %p172 = pneg %p55
        $region30: #{tpu_custom_call.1} parent=27 // pred_check_branch
          %174 = sbr.rel (%p172) target = $region32
        $region31: #{tpu_custom_call.1} parent=27 // pred_region
          %176 = dma.done %s168, 512
        $region32: #{tpu_custom_call.1} parent=27 // pred_fallthru
          _
        // Predicated region
        $region33: #{tpu_custom_call.1} parent=27 // pred_check
          %p177 = pneg %p76
        $region34: #{tpu_custom_call.1} parent=27 // pred_check_branch
          %179 = sbr.rel (%p177) target = $region36
        $region35: #{tpu_custom_call.1} parent=27 // pred_region
          %181 = dma.done [#allocation8], 2048
        $region36: #{tpu_custom_call.1} parent=27 // pred_fallthru
          _
        %s182 = sand.u32 %s42, 1
        %s183 = scalar_lea.sflag [#allocation5], %s182
        %s184 = sand.u32 %s42, 1
        %s185 = smul.addr %s184, 32
        %s186 = scalar_lea.vmem [#allocation4], %s185
        %p187 = pneg %p55
        %p188 = pneg %p52
        %p189 = pneg %p76
        %p190 = pneg %p73
        %p191 = pneg %p104
        %p192 = pneg %p101
        %s193 = sand.u32 %s91, 1
        %s194 = scalar_lea.sflag [#allocation6], %s193
        %s195 = sand.u32 %s91, 1
        %s196 = smul.addr %s195, 8
        %s197 = scalar_lea.vmem [#allocation9], %s196
        %p198 = scmp.eq.s32.totalorder %s25, 0
        // Predicated region
        $region37: #{tpu_custom_call.1} parent=27 // pred_check
          %p199 = pneg %p198
        $region38: #{tpu_custom_call.1} parent=27 // pred_check_branch
          %201 = sbr.rel (%p199) target = $region40
        $region39: #{tpu_custom_call.1} parent=27 // pred_region
          %vm202 = vcmask 261120
          %203 = vst.msk [vmem:[#allocation2] sm:$0xff] %vm202, 0.0
          %204 = vst.msk [vmem:[#allocation3] sm:$0xff] %vm202, 0.0
        $region40: #{tpu_custom_call.1} parent=27 // pred_fallthru
          _
        %v205 = vld [vmem:[#allocation2] sm:$0xff]
        %v206 = vld [vmem:[%s171] sm:$0xff]
        %v207 = vld [vmem:[#allocation7] sm:$0xff]
        %v208 = vld [vmem:[#allocation7 + $0x8] sm:$0xff]
        %v209 = vld [vmem:[#allocation7 + $0x10] sm:$0xff]
        %v210 = vld [vmem:[#allocation7 + $0x18] sm:$0xff]
        %vm211 = vcmask 261120
        %v213 = vsel %vm211, %v205, 0
        %215 = vmatpush.msra.mxu0 0.0
        %216 = vmatpush.msra.mxu0 0.0
        %217 = vmatpush.msra.mxu0 0.0
        %218 = vmatpush.msra.mxu0 0.0
        %219 = vmatpush.msra.mxu0 0.0
        %220 = vmatpush.msra.mxu0 0.0
        %221 = vmatpush.msra.mxu0 0.0
        %222 = vmatpush.msra.mxu0 0.0
        %223 = vmatpush.msra.mxu0 0.0
        %224 = vmatpush.msra.mxu0 0.0
        %225 = vmatpush.msra.mxu0 0.0
        %226 = vmatpush.msra.mxu0 0.0
        %227 = vmatpush.msra.mxu0 %v210
        %228 = vmatpush.msra.mxu0 %v209
        %229 = vmatpush.msra.mxu0 %v208
        %230 = vmatpush.msra.mxu0 %v207
        %231 = vmatmul.f32.gmra.mxu0 %v213
        %v232 = vpop.f32.mrf.mxu0
        %v233 = vadd.f32 0.0, %v232
        %234 = vdwg.mxu0
        %v235 = vadd.f32 %v206, %v233
        %s236 = scalar_lea.vmem %s171, 8 [#allocation4]
        %v237 = vld [vmem:[%s236] sm:$0xff]
        %s238 = scalar_lea.vmem [#allocation7], 32
        %v239 = vld [vmem:[%s238] sm:$0xff]
        %v240 = vld [vmem:[%s238 + $0x8] sm:$0xff]
        %v241 = vld [vmem:[%s238 + $0x10] sm:$0xff]
        %v242 = vld [vmem:[%s238 + $0x18] sm:$0xff]
        %243 = vmatpush.msra.mxu0 0.0
        %244 = vmatpush.msra.mxu0 0.0
        %245 = vmatpush.msra.mxu0 0.0
        %246 = vmatpush.msra.mxu0 0.0
        %247 = vmatpush.msra.mxu0 0.0
        %248 = vmatpush.msra.mxu0 0.0
        %249 = vmatpush.msra.mxu0 0.0
        %250 = vmatpush.msra.mxu0 0.0
        %251 = vmatpush.msra.mxu0 0.0
        %252 = vmatpush.msra.mxu0 0.0
        %253 = vmatpush.msra.mxu0 0.0
        %254 = vmatpush.msra.mxu0 0.0
        %255 = vmatpush.msra.mxu0 %v242
        %256 = vmatpush.msra.mxu0 %v241
        %257 = vmatpush.msra.mxu0 %v240
        %258 = vmatpush.msra.mxu0 %v239
        %259 = vmatmul.f32.gmra.mxu0 %v213
        %v260 = vpop.f32.mrf.mxu0
        %v261 = vadd.f32 0.0, %v260
        %262 = vdwg.mxu0
        %v263 = vadd.f32 %v237, %v261
        %s264 = scalar_lea.vmem %s171, 16 [#allocation4]
        %v265 = vld [vmem:[%s264] sm:$0xff]
        %s266 = scalar_lea.vmem [#allocation7], 64
        %v267 = vld [vmem:[%s266] sm:$0xff]
        %v268 = vld [vmem:[%s266 + $0x8] sm:$0xff]
        %v269 = vld [vmem:[%s266 + $0x10] sm:$0xff]
        %v270 = vld [vmem:[%s266 + $0x18] sm:$0xff]
        %271 = vmatpush.msra.mxu0 0.0
        %272 = vmatpush.msra.mxu0 0.0
        %273 = vmatpush.msra.mxu0 0.0
        %274 = vmatpush.msra.mxu0 0.0
        %275 = vmatpush.msra.mxu0 0.0
        %276 = vmatpush.msra.mxu0 0.0
        %277 = vmatpush.msra.mxu0 0.0
        %278 = vmatpush.msra.mxu0 0.0
        %279 = vmatpush.msra.mxu0 0.0
        %280 = vmatpush.msra.mxu0 0.0
        %281 = vmatpush.msra.mxu0 0.0
        %282 = vmatpush.msra.mxu0 0.0
        %283 = vmatpush.msra.mxu0 %v270
        %284 = vmatpush.msra.mxu0 %v269
        %285 = vmatpush.msra.mxu0 %v268
        %286 = vmatpush.msra.mxu0 %v267
        %287 = vmatmul.f32.gmra.mxu0 %v213
        %v288 = vpop.f32.mrf.mxu0
        %v289 = vadd.f32 0.0, %v288
        %290 = vdwg.mxu0
        %v291 = vadd.f32 %v265, %v289
        %s292 = scalar_lea.vmem %s171, 24 [#allocation4]
        %v293 = vld [vmem:[%s292] sm:$0xff]
        %s294 = scalar_lea.vmem [#allocation7], 96
        %v295 = vld [vmem:[%s294] sm:$0xff]
        %v296 = vld [vmem:[%s294 + $0x8] sm:$0xff]
        %v297 = vld [vmem:[%s294 + $0x10] sm:$0xff]
        %v298 = vld [vmem:[%s294 + $0x18] sm:$0xff]
        %299 = vmatpush.msra.mxu0 0.0
        %300 = vmatpush.msra.mxu0 0.0
        %301 = vmatpush.msra.mxu0 0.0
        %302 = vmatpush.msra.mxu0 0.0
        %303 = vmatpush.msra.mxu0 0.0
        %304 = vmatpush.msra.mxu0 0.0
        %305 = vmatpush.msra.mxu0 0.0
        %306 = vmatpush.msra.mxu0 0.0
        %307 = vmatpush.msra.mxu0 0.0
        %308 = vmatpush.msra.mxu0 0.0
        %309 = vmatpush.msra.mxu0 0.0
        %310 = vmatpush.msra.mxu0 0.0
        %311 = vmatpush.msra.mxu0 %v298
        %312 = vmatpush.msra.mxu0 %v297
        %313 = vmatpush.msra.mxu0 %v296
        %314 = vmatpush.msra.mxu0 %v295
        %315 = vmatmul.f32.gmra.mxu0 %v213
        %v316 = vpop.f32.mrf.mxu0
        %v317 = vadd.f32 0.0, %v316
        %318 = vdwg.mxu0
        %v319 = vadd.f32 %v293, %v317
        %v320 = vxor.u32 %v235, 2147483648
        %v321 = vmul.f32 %v320, 1.442695
        %v322 = vpow.pop %v321
        %v323 = vadd.f32 %v322, 1.0
        %v324 = vrcp.pop %v323
        %v325 = vmul.f32 %v323, %v324
        %v326 = vsub.f32 1.0, %v325
        %v327 = vmul.f32 %v324, %v326
        %v328 = vadd.f32 %v324, %v327
        %vm329 = vweird.f32 %v323
        %vm330 = vweird.f32 %v324
        %vm331 = vmor %vm329, %vm330
        %v332 = vsel %vm331, %v324, %v328
        %v333 = vand.u32 2147483647, %v323
        %vm334 = vcmp.eq.f32.partialorder %v333, 8.507059e+37
        %v335 = vand.u32 %v323, 2147483648
        %v336 = vor.u32 1.1754944e-38, %v335
        %v337 = vsel %vm334, %v336, %v332
        %v338 = vmul.f32 1.0, %v337
        %v339 = vxor.u32 %v263, 2147483648
        %v340 = vmul.f32 %v339, 1.442695
        %v341 = vpow.pop %v340
        %v342 = vadd.f32 %v341, 1.0
        %v343 = vrcp.pop %v342
        %v344 = vmul.f32 %v342, %v343
        %v345 = vsub.f32 1.0, %v344
        %v346 = vmul.f32 %v343, %v345
        %v347 = vadd.f32 %v343, %v346
        %vm348 = vweird.f32 %v342
        %vm349 = vweird.f32 %v343
        %vm350 = vmor %vm348, %vm349
        %v351 = vsel %vm350, %v343, %v347
        %v352 = vand.u32 2147483647, %v342
        %vm353 = vcmp.eq.f32.partialorder %v352, 8.507059e+37
        %v354 = vand.u32 %v342, 2147483648
        %v355 = vor.u32 1.1754944e-38, %v354
        %v356 = vsel %vm353, %v355, %v351
        %v357 = vmul.f32 1.0, %v356
        %v358 = vtanh.pop %v291
        %v359 = vxor.u32 %v319, 2147483648
        %v360 = vmul.f32 %v359, 1.442695
        %v361 = vpow.pop %v360
        %v362 = vadd.f32 %v361, 1.0
        %v363 = vrcp.pop %v362
        %v364 = vmul.f32 %v362, %v363
        %v365 = vsub.f32 1.0, %v364
        %v366 = vmul.f32 %v363, %v365
        %v367 = vadd.f32 %v363, %v366
        %vm368 = vweird.f32 %v362
        %vm369 = vweird.f32 %v363
        %vm370 = vmor %vm368, %vm369
        %v371 = vsel %vm370, %v363, %v367
        %v372 = vand.u32 2147483647, %v362
        %vm373 = vcmp.eq.f32.partialorder %v372, 8.507059e+37
        %v374 = vand.u32 %v362, 2147483648
        %v375 = vor.u32 1.1754944e-38, %v374
        %v376 = vsel %vm373, %v375, %v371
        %v377 = vmul.f32 1.0, %v376
        %v378 = vld [vmem:[#allocation3] sm:$0xff]
        %v379 = vmul.f32 %v357, %v378
        %v380 = vmul.f32 %v338, %v358
        %v381 = vadd.f32 %v379, %v380
        %v382 = vtanh.pop %v381
        %v383 = vmul.f32 %v377, %v382
        %384 = vst.msk [vmem:[#allocation3] sm:$0xff] %vm211, %v381
        %385 = vst.msk [vmem:[#allocation2] sm:$0xff] %vm211, %v383
        %386 = vst.msk [vmem:[%s197] sm:$0xff] %vm211, %v383
        %s387 = sand.u32 %s91, 1
        %s388 = scalar_lea.sflag [#allocation6], %s387
        %s389 = sand.u32 %s91, 1
        %s390 = smul.addr %s389, 8
        %s391 = scalar_lea.vmem [#allocation9], %s390
        // Predicated region
        $region41: #{tpu_custom_call.1} parent=27 // pred_check
          %p392 = pneg %p101
        $region42: #{tpu_custom_call.1} parent=27 // pred_check_branch
          %394 = sbr.rel (%p392) target = $region44
        $region43: #{tpu_custom_call.1} parent=27 // pred_region
          %396 = vsyncadd %s388, 0
          %s397 = sadd.s32 %s24, %s25
          %s398 = smul.addr %s397, 8
          %s399 = scalar_lea.hbm %s2, %s398
          %s401 = sshll.u32 %s391, 4
          %s402 = int_to_ptr.vmem [resolvable:$true] %s401
          %s403 = sshll.u32 %s399, 4
          %s404 = int_to_ptr.hbm [resolvable:$true] %s403
          %406 = dma.vmem_to_hbm [thread:$0]  %s402, 128, %s404, %s388
        $region44: #{tpu_custom_call.1} parent=27 // pred_fallthru
          _
      $region28: #{tpu_custom_call.1} parent=5 // pred_fallthru
        _
      %p407 = scmp.le.s32.totalorder 2, %s15
      // Predicated region
      $region45: #{tpu_custom_call.1} parent=5 // pred_check
        %p408 = pneg %p407
      $region46: #{tpu_custom_call.1} parent=5 // pred_check_branch
        %410 = sbr.rel (%p408) target = $region48
      $region47: #{tpu_custom_call.1} parent=5 // pred_region
        %s411 = ssub.s32 %s15, 2
        // Predicated region
        $region49: #{tpu_custom_call.1} parent=47 // pred_check
          %p412 = pneg %p107
        $region50: #{tpu_custom_call.1} parent=47 // pred_check_branch
          %414 = sbr.rel (%p412) target = $region52
        $region51: #{tpu_custom_call.1} parent=47 // pred_region
          %s415 = sand.u32 %s92, 1
          %s416 = scalar_lea.sflag [#allocation6], %s415
          %s417 = sand.u32 %s92, 1
          %s418 = smul.addr %s417, 8
          %s419 = scalar_lea.vmem [#allocation9], %s418
          %421 = dma.done %s416, 128
        $region52: #{tpu_custom_call.1} parent=47 // pred_fallthru
          _
      $region48: #{tpu_custom_call.1} parent=5 // pred_fallthru
        _
    $region6: #{tpu_custom_call.1} parent=1 // loop_footer
      %s19 = sadd.s32 1, %s15
    $region7: #{tpu_custom_call.1} parent=1 // loop_footer_branch
      %14 = sbr.rel target = $region3
    $region8: #{tpu_custom_call.1} parent=1 // loop_exit
      _
    %422 = vsyncpa [#allocation5], 1
    %s423 = scalar_lea.sflag [#allocation5], 1
    %424 = vsyncpa %s423, 1
    %425 = vsyncpa [#allocation8], 1
    %426 = vsyncpa [#allocation6], 1
    %s427 = scalar_lea.sflag [#allocation6], 1
    %428 = vsyncpa %s427, 1

</llo_original>
